<compile_context>
chip_gen: v6e
topology: v6e:2x2x1
jax: 0.10.0
libtpu: 0.0.40
codegen_flags: <defaults>
</compile_context>

<pallas_src>
import math

import jax
import jax.numpy as jnp
from jax.experimental import pallas as pl
from jax.experimental.pallas import tpu as pltpu


def _nlinear_kernel(x_ref, w_ref, b_ref, o_ref):
    # x_ref: (1, TB, d_in)   w_ref: (1, d_in, d_out)
    # b_ref: (1, 1, d_out)   o_ref: (1, TB, d_out)
    y = jnp.dot(x_ref[0], w_ref[0], preferred_element_type=jnp.float32)
    o_ref[0] = (y + b_ref[0]).astype(o_ref.dtype)


def nlinear(x, weight, bias, *, block_b=128):
    """out[b, t] = x[b, t] @ weight[t] + bias[t]  (NLinear forward)."""
    B, T, d_in = x.shape
    t_w, d_in_w, d_out = weight.shape
    assert (T, d_in) == (t_w, d_in_w)
    assert bias.shape == (T, d_out)

    # Batch tile: multiple of 8 (sublane) or the full batch.
    if B <= block_b:
        tb = B
    else:
        tb = max((block_b // 8) * 8, 8)

    # Token-major layout so each grid step is a clean 2-D MXU matmul.
    x_t = jnp.transpose(x, (1, 0, 2))          # (T, B, d_in)
    bias3 = bias.reshape(T, 1, d_out)          # (T, 1, d_out)

    grid = (T, pl.cdiv(B, tb))                 # token outer, batch inner

    out_t = pl.pallas_call(
        _nlinear_kernel,
        out_shape=jax.ShapeDtypeStruct((T, B, d_out), jnp.float32),
        grid_spec=pltpu.PrefetchScalarGridSpec(
            num_scalar_prefetch=0,
            grid=grid,
            in_specs=[
                # x tile: streams over the batch axis (double-buffered).
                pl.BlockSpec((1, tb, d_in), lambda t, i: (t, i, 0)),
                # weight / bias: constant over the inner batch axis -> resident,
                # DMA'd once per token.
                pl.BlockSpec((1, d_in, d_out), lambda t, i: (t, 0, 0)),
                pl.BlockSpec((1, 1, d_out), lambda t, i: (t, 0, 0)),
            ],
            out_specs=pl.BlockSpec((1, tb, d_out), lambda t, i: (t, i, 0)),
        ),
        compiler_params=pltpu.CompilerParams(
            dimension_semantics=("parallel", "parallel"),
            vmem_limit_bytes=32 * 1024 * 1024,
        ),
    )(x_t, weight, bias3)

    # Back to the module's (batch, n_tokens, d_out) layout.
    return jnp.transpose(out_t, (1, 0, 2))
    # Note: the bias=False variant of NLinear would simply drop the bias input
    # and the `+ b_ref[0]` term.


if __name__ == "__main__":
    # Small, TPU-friendly shapes consistent with the module.
    batch_size = 256
    n_tokens = 8
    d_in = 64
    d_out = 128

    key = jax.random.PRNGKey(0)
    k_w, k_b, k_x = jax.random.split(key, 3)

    # reset_parameters(): Uniform(-1/sqrt(d_in), 1/sqrt(d_in))
    bound = 1.0 / math.sqrt(d_in)
    weight = jax.random.uniform(
        k_w, (n_tokens, d_in, d_out), jnp.float32, -bound, bound)
    bias = jax.random.uniform(
        k_b, (n_tokens, d_out), jnp.float32, -bound, bound)
    x = jax.random.normal(k_x, (batch_size, n_tokens, d_in), jnp.float32)

    out = nlinear(x, weight, bias, block_b=128)
    out = jax.block_until_ready(out)

    # Pure-JAX reference of the PyTorch forward:
    #   (x[..., None] * weight[None]).sum(-2) + bias[None]
    ref = jnp.einsum("btd,tde->bte", x, weight,
                     precision=jax.lax.Precision.HIGHEST) + bias[None]
    assert out.shape == (batch_size, n_tokens, d_out)
    assert jnp.allclose(out, ref, atol=1e-4, rtol=1e-4), \
        float(jnp.max(jnp.abs(out - ref)))

    print("KERNEL_OK")
</pallas_src>

<mosaic_0001>
module attributes {stable_mosaic.version = 11 : i64} {
  func.func @_nlinear_kernel(%arg0: i32, %arg1: i32, %arg2: memref<1x128x64xf32, #tpu.memory_space<vmem>>, %arg3: memref<1x64x128xf32, #tpu.memory_space<vmem>>, %arg4: memref<1x1x128xf32, #tpu.memory_space<vmem>>, %arg5: memref<1x128x128xf32, #tpu.memory_space<vmem>>) attributes {dimension_semantics = [#tpu.dimension_semantics<parallel>, #tpu.dimension_semantics<parallel>], iteration_bounds = array<i64: 8, 2>, scalar_prefetch = 0 : i64, scratch_operands = 0 : i64, tpu.core_type = #tpu.core_type<tc>, window_params = [{transform_indices = @transform_0, window_bounds = array<i64: 1, 128, 64>}, {transform_indices = @transform_1, window_bounds = array<i64: 1, 64, 128>}, {transform_indices = @transform_2, window_bounds = array<i64: 1, 1, 128>}, {transform_indices = @transform_3, window_bounds = array<i64: 1, 128, 128>}]} {
    %c0 = arith.constant 0 : index
    %c0_0 = arith.constant 0 : index
    %c0_1 = arith.constant 0 : index
    %0 = vector.load %arg2[%c0, %c0_0, %c0_1] : memref<1x128x64xf32, #tpu.memory_space<vmem>>, vector<1x128x64xf32>
    %1 = vector.shape_cast %0 : vector<1x128x64xf32> to vector<128x64xf32>
    %c0_2 = arith.constant 0 : index
    %c0_3 = arith.constant 0 : index
    %c0_4 = arith.constant 0 : index
    %2 = vector.load %arg3[%c0_2, %c0_3, %c0_4] : memref<1x64x128xf32, #tpu.memory_space<vmem>>, vector<1x64x128xf32>
    %3 = vector.shape_cast %2 : vector<1x64x128xf32> to vector<64x128xf32>
    %cst = arith.constant dense<0.000000e+00> : vector<128x128xf32>
    %4 = tpu.matmul %1, %3, %cst {dimension_numbers = #tpu.dot_dimension_numbers<[1], [0], [0], [1], [0, 0, 1, 1], [], []>} : vector<128x64xf32>, vector<64x128xf32>, vector<128x128xf32> -> vector<128x128xf32>
    %c0_5 = arith.constant 0 : index
    %c0_6 = arith.constant 0 : index
    %c0_7 = arith.constant 0 : index
    %5 = vector.load %arg4[%c0_5, %c0_6, %c0_7] : memref<1x1x128xf32, #tpu.memory_space<vmem>>, vector<1x1x128xf32>
    %6 = vector.shape_cast %5 : vector<1x1x128xf32> to vector<1x128xf32>
    %7 = vector.broadcast %6 : vector<1x128xf32> to vector<128x128xf32>
    %8 = arith.addf %4, %7 : vector<128x128xf32>
    %c0_8 = arith.constant 0 : index
    %c0_9 = arith.constant 0 : index
    %c0_10 = arith.constant 0 : index
    %9 = vector.load %arg5[%c0_8, %c0_9, %c0_10] : memref<1x128x128xf32, #tpu.memory_space<vmem>>, vector<1x128x128xf32>
    %10 = vector.shape_cast %9 : vector<1x128x128xf32> to vector<128x128xf32>
    %11 = vector.shape_cast %8 : vector<128x128xf32> to vector<1x128x128xf32>
    tpu.vector_store %arg5[%c0_8, %c0_9, %c0_10], %11 {strides = array<i32>} : memref<1x128x128xf32, #tpu.memory_space<vmem>>, vector<1x128x128xf32>,
    return
  }
  func.func @transform_0(%arg0: i32, %arg1: i32) -> (i32, i32, i32) {
    %c0_i32 = arith.constant 0 : i32
    %c0_i32_0 = arith.constant 0 : i32
    return %arg0, %arg1, %c0_i32 : i32, i32, i32
  }
  func.func @transform_1(%arg0: i32, %arg1: i32) -> (i32, i32, i32) {
    %c0_i32 = arith.constant 0 : i32
    %c0_i32_0 = arith.constant 0 : i32
    %c0_i32_1 = arith.constant 0 : i32
    return %arg0, %c0_i32, %c0_i32_0 : i32, i32, i32
  }
  func.func @transform_2(%arg0: i32, %arg1: i32) -> (i32, i32, i32) {
    %c0_i32 = arith.constant 0 : i32
    %c0_i32_0 = arith.constant 0 : i32
    %c0_i32_1 = arith.constant 0 : i32
    return %arg0, %c0_i32, %c0_i32_0 : i32, i32, i32
  }
  func.func @transform_3(%arg0: i32, %arg1: i32) -> (i32, i32, i32) {
    %c0_i32 = arith.constant 0 : i32
    %c0_i32_0 = arith.constant 0 : i32
    return %arg0, %arg1, %c0_i32 : i32, i32, i32
  }
}

</mosaic_0001>

<llo_original>
// kernel: tpu_custom_call.1
$region0: #{tpu_custom_call.1}
  #allocation0 [shape = 'u32[]', space=smem, size = 0x4, offset = 0x4, fixed_abs, tag = 'smem constant byte address 0x4 - core index']
  #allocation1 [shape = 'u32[144,128]{1,0:T(1,128)}', space=vmem, size = 0x12000, scoped, tag = 'internal scratch']
  %s0 = inlined_call_operand.vmem [shape: f32[8,256,64], index: 0, kind: input, shape index: {}]
  %s1 = inlined_call_operand.vmem [shape: f32[8,64,128], index: 1, kind: input, shape index: {}]
  %s2 = inlined_call_operand.vmem [shape: f32[8,1,128], index: 2, kind: input, shape index: {}]
  %s3 = inlined_call_operand.hbm [shape: f32[8,256,128], index: 3, kind: output, shape index: {}]
  %s4 = sld [smem:[#allocation0]]
  $region45: #{tpu_custom_call.1} parent=0
    _
  %s6 = ssub.s32 1, %s4
  %s7 = scalar_select 0, %s6, %s4
  $region1: #{tpu_custom_call.1} parent=0
    #allocation2 [shape = 'u8[131072]{0}', space=vmem, size = 0x20000, scoped, tag = 'output window, operand 0']
    #allocation3 [shape = 's32[2]{0}', space=sflag, size = 0x8, scoped, tag = 'scoped memory for tpu_custom_call.1']
    %8 = vsyncpa [#allocation3], 0
    %s9 = scalar_lea.sflag [#allocation3], 1
    %10 = vsyncpa %s9, 0
    loop: start=0, step=1, limit=18
    $region2: #{tpu_custom_call.1} parent=1 // loop_pre_header
      _
    $region3: #{tpu_custom_call.1} parent=1 // loop_header
      %s12 = sphi 0, %s16
      %p13 = scmp.ge.s32.totalorder %s12, 18
      %s19 = sphi 0, %s31
      %s20 = sphi 0, %s27
      %s21 = sphi 0, %s19
      %s22 = sphi 0, %s20
      %s23 = sphi 0, %s21
      %s24 = sphi 0, %s22
      %s36 = sphi 0, %s38
      %s39 = sphi 0, %s36
      %s40 = sphi 0, %s39
      %s56 = sphi 0, %s40
      %s62 = sphi 0, %s64
      %s65 = sphi 0, %s62
      %s66 = sphi 0, %s65
      %s82 = sphi 0, %s66
      %s88 = sphi 0, %s90
      %s91 = sphi 0, %s88
      %s92 = sphi 0, %s91
      %s108 = sphi 0, %s92
      %s116 = sphi 0, %s118
      %s119 = sphi 0, %s116
      %s120 = sphi 0, %s119
      %s136 = sphi 0, %s120
    $region4: #{tpu_custom_call.1} parent=1 // loop_header_branch
      %15 = sbr.rel (%p13) target = $region8
    $region5: #{tpu_custom_call.1} parent=1 // loop_body
      %s17 = ssub.s32 %s12, 1
      %s18 = ssub.s32 %s12, 2
      %s25 = sadd.s32 1, %s20
      %p26 = scmp.ge.s32.totalorder %s25, 2
      %s27 = scalar_select %p26, 0, %s25
      %s28 = sadd.s32 1, %s19
      %s29 = scalar_select %p26, %s28, %s19
      %p30 = scmp.ge.s32.totalorder %s29, 8
      %s31 = scalar_select %p30, 0, %s29
      %s32 = ssub.s32 %s19, %s31
      %s33 = ssub.s32 %s20, %s27
      %s34 = sor.u32 %s32, %s33
      %p35 = scmp.eq.s32.totalorder %s34, 0
      %s37 = sadd.s32 %s36, 1
      %s38 = scalar_select %p35, %s36, %s37
      %p41 = pneg %p35
      %p42 = scmp.eq.s32.totalorder %s12, 15
      %p43 = por %p41, %p42
      %p44 = scmp.ne.s32.totalorder %s36, %s39
      %p45 = scmp.eq.s32.totalorder %s12, 0
      %p46 = por %p44, %p45
      %p47 = scmp.ne.s32.totalorder %s36, %s39
      %p48 = scmp.eq.s32.totalorder %s17, 15
      %p49 = por %p47, %p48
      %p50 = scmp.ne.s32.totalorder %s39, %s40
      %p51 = scmp.eq.s32.totalorder %s17, 0
      %p52 = por %p50, %p51
      %p53 = scmp.ne.s32.totalorder %s39, %s40
      %p54 = scmp.eq.s32.totalorder %s18, 15
      %p55 = por %p53, %p54
      %p57 = scmp.ne.s32.totalorder %s40, %s56
      %p58 = scmp.eq.s32.totalorder %s18, 0
      %p59 = por %p57, %p58
      %s60 = ssub.s32 %s19, %s31
      %p61 = scmp.eq.s32.totalorder %s60, 0
      %s63 = sadd.s32 %s62, 1
      %s64 = scalar_select %p61, %s62, %s63
      %p67 = pneg %p61
      %p68 = scmp.eq.s32.totalorder %s12, 15
      %p69 = por %p67, %p68
      %p70 = scmp.ne.s32.totalorder %s62, %s65
      %p71 = scmp.eq.s32.totalorder %s12, 0
      %p72 = por %p70, %p71
      %p73 = scmp.ne.s32.totalorder %s62, %s65
      %p74 = scmp.eq.s32.totalorder %s17, 15
      %p75 = por %p73, %p74
      %p76 = scmp.ne.s32.totalorder %s65, %s66
      %p77 = scmp.eq.s32.totalorder %s17, 0
      %p78 = por %p76, %p77
      %p79 = scmp.ne.s32.totalorder %s65, %s66
      %p80 = scmp.eq.s32.totalorder %s18, 15
      %p81 = por %p79, %p80
      %p83 = scmp.ne.s32.totalorder %s66, %s82
      %p84 = scmp.eq.s32.totalorder %s18, 0
      %p85 = por %p83, %p84
      %s86 = ssub.s32 %s19, %s31
      %p87 = scmp.eq.s32.totalorder %s86, 0
      %s89 = sadd.s32 %s88, 1
      %s90 = scalar_select %p87, %s88, %s89
      %p93 = pneg %p87
      %p94 = scmp.eq.s32.totalorder %s12, 15
      %p95 = por %p93, %p94
      %p96 = scmp.ne.s32.totalorder %s88, %s91
      %p97 = scmp.eq.s32.totalorder %s12, 0
      %p98 = por %p96, %p97
      %p99 = scmp.ne.s32.totalorder %s88, %s91
      %p100 = scmp.eq.s32.totalorder %s17, 15
      %p101 = por %p99, %p100
      %p102 = scmp.ne.s32.totalorder %s91, %s92
      %p103 = scmp.eq.s32.totalorder %s17, 0
      %p104 = por %p102, %p103
      %p105 = scmp.ne.s32.totalorder %s91, %s92
      %p106 = scmp.eq.s32.totalorder %s18, 15
      %p107 = por %p105, %p106
      %p109 = scmp.ne.s32.totalorder %s92, %s108
      %p110 = scmp.eq.s32.totalorder %s18, 0
      %p111 = por %p109, %p110
      %s112 = ssub.s32 %s19, %s31
      %s113 = ssub.s32 %s20, %s27
      %s114 = sor.u32 %s112, %s113
      %p115 = scmp.eq.s32.totalorder %s114, 0
      %s117 = sadd.s32 %s116, 1
      %s118 = scalar_select %p115, %s116, %s117
      %p121 = pneg %p115
      %p122 = scmp.eq.s32.totalorder %s12, 15
      %p123 = por %p121, %p122
      %p124 = scmp.ne.s32.totalorder %s116, %s119
      %p125 = scmp.eq.s32.totalorder %s12, 0
      %p126 = por %p124, %p125
      %p127 = scmp.ne.s32.totalorder %s116, %s119
      %p128 = scmp.eq.s32.totalorder %s17, 15
      %p129 = por %p127, %p128
      %p130 = scmp.ne.s32.totalorder %s119, %s120
      %p131 = scmp.eq.s32.totalorder %s17, 0
      %p132 = por %p130, %p131
      %p133 = scmp.ne.s32.totalorder %s119, %s120
      %p134 = scmp.eq.s32.totalorder %s18, 15
      %p135 = por %p133, %p134
      %p137 = scmp.ne.s32.totalorder %s120, %s136
      %p138 = scmp.eq.s32.totalorder %s18, 0
      %p139 = por %p137, %p138
      %p140 = scmp.le.s32.totalorder 1, %s12
      %p141 = scmp.lt.s32.totalorder %s12, 17
      %p142 = pnand %p140, %p141
      %p143 = pneg %p142
      // Predicated region
      $region9: #{tpu_custom_call.1} parent=5 // pred_check
        _
      $region10: #{tpu_custom_call.1} parent=5 // pred_check_branch
        %145 = sbr.rel (%p142) target = $region12
      $region11: #{tpu_custom_call.1} parent=5 // pred_region
        %s146 = ssub.s32 %s12, 1
      $region12: #{tpu_custom_call.1} parent=5 // pred_fallthru
        _
      %p147 = scmp.lt.s32.totalorder %s12, 16
      // Predicated region
      $region13: #{tpu_custom_call.1} parent=5 // pred_check
        %p148 = pneg %p147
      $region14: #{tpu_custom_call.1} parent=5 // pred_check_branch
        %150 = sbr.rel (%p148) target = $region16
      $region15: #{tpu_custom_call.1} parent=5 // pred_region
        // Predicated region
        $region17: #{tpu_custom_call.1} parent=15 // pred_check
          %p151 = pneg %p46
        $region18: #{tpu_custom_call.1} parent=15 // pred_check_branch
          %153 = sbr.rel (%p151) target = $region20
        $region19: #{tpu_custom_call.1} parent=15 // pred_region
          %s154 = smul.u32 16, %s20
          %p155 = scmp.lt.s32.totalorder %s19, 7
          %s156 = scalar_select %p155, %s19, 7
          %p157 = scmp.lt.s32.totalorder %s154, 31
          %s158 = scalar_select %p157, %s154, 31
          %s159 = smul.addr %s156, 32
          %s160 = sadd.s32 %s158, %s159
          %s161 = smul.addr %s160, 8
          %s162 = scalar_lea.vmem %s0, %s161
          %s163 = smul.u32 16, %s20
        $region20: #{tpu_custom_call.1} parent=15 // pred_fallthru
          _
        // Predicated region
        $region21: #{tpu_custom_call.1} parent=15 // pred_check
          %p164 = pneg %p72
        $region22: #{tpu_custom_call.1} parent=15 // pred_check_branch
          %166 = sbr.rel (%p164) target = $region24
        $region23: #{tpu_custom_call.1} parent=15 // pred_region
          %p167 = scmp.lt.s32.totalorder %s19, 7
          %s168 = scalar_select %p167, %s19, 7
          %s169 = smul.addr %s168, 8
          %s170 = smul.addr %s169, 8
          %s171 = scalar_lea.vmem %s1, %s170
        $region24: #{tpu_custom_call.1} parent=15 // pred_fallthru
          _
        // Predicated region
        $region25: #{tpu_custom_call.1} parent=15 // pred_check
          %p172 = pneg %p98
        $region26: #{tpu_custom_call.1} parent=15 // pred_check_branch
          %174 = sbr.rel (%p172) target = $region28
        $region27: #{tpu_custom_call.1} parent=15 // pred_region
          %p175 = scmp.lt.s32.totalorder %s19, 7
          %s176 = scalar_select %p175, %s19, 7
          %s177 = scalar_lea.vmem %s2, %s176
        $region28: #{tpu_custom_call.1} parent=15 // pred_fallthru
          _
      $region16: #{tpu_custom_call.1} parent=5 // pred_fallthru
        _
      %p178 = scmp.le.s32.totalorder 1, %s12
      %p179 = scmp.lt.s32.totalorder %s12, 17
      %p180 = pnand %p178, %p179
      %p181 = pneg %p180
      // Predicated region
      $region29: #{tpu_custom_call.1} parent=5 // pred_check
        _
      $region30: #{tpu_custom_call.1} parent=5 // pred_check_branch
        %183 = sbr.rel (%p180) target = $region32
      $region31: #{tpu_custom_call.1} parent=5 // pred_region
        %s184 = ssub.s32 %s12, 1
        %s185 = smul.u32 16, %s22
        %p186 = scmp.lt.s32.totalorder %s21, 7
        %s187 = scalar_select %p186, %s21, 7
        %p188 = scmp.lt.s32.totalorder %s185, 31
        %s189 = scalar_select %p188, %s185, 31
        %s190 = smul.addr %s187, 32
        %s191 = sadd.s32 %s189, %s190
        %s192 = smul.addr %s191, 8
        %s193 = scalar_lea.vmem %s0, %s192
        %p194 = pneg %p52
        %p195 = pneg %p49
        %p196 = scmp.lt.s32.totalorder %s21, 7
        %s197 = scalar_select %p196, %s21, 7
        %s198 = smul.addr %s197, 8
        %s199 = smul.addr %s198, 8
        %s200 = scalar_lea.vmem %s1, %s199
        %p201 = pneg %p78
        %p202 = pneg %p75
        %p203 = scmp.lt.s32.totalorder %s21, 7
        %s204 = scalar_select %p203, %s21, 7
        %s205 = scalar_lea.vmem %s2, %s204
        %p206 = pneg %p104
        %p207 = pneg %p101
        %p208 = pneg %p132
        %p209 = pneg %p129
        %s210 = sand.u32 %s119, 1
        %s211 = scalar_lea.sflag [#allocation3], %s210
        %s212 = sand.u32 %s119, 1
        %s213 = smul.addr %s212, 128
        %s214 = scalar_lea.vmem [#allocation2], %s213
        %s215 = smul.u32 16, %s22
        %p216 = scmp.lt.s32.totalorder %s21, 7
        %s217 = scalar_select %p216, %s21, 7
        %p218 = scmp.lt.s32.totalorder %s215, 31
        %s219 = scalar_select %p218, %s215, 31
        %s220 = smul.addr %s217, 32
        %s221 = sadd.s32 %s219, %s220
        %s222 = smul.addr %s221, 8
        %s223 = scalar_lea.vmem %s0, %s222
        %s224 = smul.u32 16, %s22
        %p225 = scmp.lt.s32.totalorder %s21, 7
        %s226 = scalar_select %p225, %s21, 7
        %s227 = smul.addr %s226, 8
        %s228 = smul.addr %s227, 8
        %s229 = scalar_lea.vmem %s1, %s228
        %p230 = scmp.lt.s32.totalorder %s21, 7
        %s231 = scalar_select %p230, %s21, 7
        %s232 = scalar_lea.vmem %s2, %s231
        %s233 = smul.u32 16, %s22
        %v234 = vld [vmem:[%s223] sm:$0xff]
        %v235 = vld [vmem:[%s223 + $0x8] sm:$0xff]
        %v236 = vld [vmem:[%s223 + $0x10] sm:$0xff]
        %v237 = vld [vmem:[%s223 + $0x18] sm:$0xff]
        %v238 = vld [vmem:[%s223 + $0x20] sm:$0xff]
        %v239 = vld [vmem:[%s223 + $0x28] sm:$0xff]
        %v240 = vld [vmem:[%s223 + $0x30] sm:$0xff]
        %v241 = vld [vmem:[%s223 + $0x38] sm:$0xff]
        %v242 = vld [vmem:[%s223 + $0x40] sm:$0xff]
        %v243 = vld [vmem:[%s223 + $0x48] sm:$0xff]
        %v244 = vld [vmem:[%s223 + $0x50] sm:$0xff]
        %v245 = vld [vmem:[%s223 + $0x58] sm:$0xff]
        %v246 = vld [vmem:[%s223 + $0x60] sm:$0xff]
        %v247 = vld [vmem:[%s223 + $0x68] sm:$0xff]
        %v248 = vld [vmem:[%s223 + $0x70] sm:$0xff]
        %v249 = vld [vmem:[%s223 + $0x78] sm:$0xff]
        %v250 = vld [vmem:[%s229] sm:$0xff]
        %v251 = vld [vmem:[%s229 + $0x8] sm:$0xff]
        %v252 = vld [vmem:[%s229 + $0x10] sm:$0xff]
        %v253 = vld [vmem:[%s229 + $0x18] sm:$0xff]
        %v254 = vld [vmem:[%s229 + $0x20] sm:$0xff]
        %v255 = vld [vmem:[%s229 + $0x28] sm:$0xff]
        %v256 = vld [vmem:[%s229 + $0x30] sm:$0xff]
        %v257 = vld [vmem:[%s229 + $0x38] sm:$0xff]
        %v258 = vld [vmem:[%s232] sm:$0x1]
        %v260 = vlaneseq
        %v261 = vshrl.u32 %v260, 7
        %v262 = vsub.s32 0, %v261
        %v263 = vrot.slane %v258, %v262
        %vm265 = vcmask 523264
        %v267 = vsel %vm265, %v234, 0
        %v270 = vsel %vm265, %v235, 0
        %v273 = vsel %vm265, %v236, 0
        %v276 = vsel %vm265, %v237, 0
        %v279 = vsel %vm265, %v238, 0
        %v282 = vsel %vm265, %v239, 0
        %v285 = vsel %vm265, %v240, 0
        %v288 = vsel %vm265, %v241, 0
        %v291 = vsel %vm265, %v242, 0
        %v294 = vsel %vm265, %v243, 0
        %v297 = vsel %vm265, %v244, 0
        %v300 = vsel %vm265, %v245, 0
        %v303 = vsel %vm265, %v246, 0
        %v306 = vsel %vm265, %v247, 0
        %v309 = vsel %vm265, %v248, 0
        %v312 = vsel %vm265, %v249, 0
        %314 = vmatprep.subr.mxu0 0.0
        %315 = vmatpush1.msra.mxu0 0.0
        %316 = vmatprep.subr.mxu0 0.0
        %317 = vmatpush1.msra.mxu0 0.0
        %318 = vmatprep.subr.mxu0 0.0
        %319 = vmatpush1.msra.mxu0 0.0
        %320 = vmatprep.subr.mxu0 0.0
        %321 = vmatpush1.msra.mxu0 0.0
        %322 = vmatprep.subr.mxu0 0.0
        %323 = vmatpush1.msra.mxu0 0.0
        %324 = vmatprep.subr.mxu0 0.0
        %325 = vmatpush1.msra.mxu0 0.0
        %326 = vmatprep.subr.mxu0 0.0
        %327 = vmatpush1.msra.mxu0 0.0
        %328 = vmatprep.subr.mxu0 0.0
        %329 = vmatpush1.msra.mxu0 0.0
        %330 = vmatprep.subr.mxu0 0.0
        %331 = vmatpush1.msra.mxu0 %v257
        %332 = vmatprep.subr.mxu0 0.0
        %333 = vmatpush1.msra.mxu0 %v256
        %334 = vmatprep.subr.mxu0 0.0
        %335 = vmatpush1.msra.mxu0 %v255
        %336 = vmatprep.subr.mxu0 0.0
        %337 = vmatpush1.msra.mxu0 %v254
        %338 = vmatprep.subr.mxu0 0.0
        %339 = vmatpush1.msra.mxu0 %v253
        %340 = vmatprep.subr.mxu0 0.0
        %341 = vmatpush1.msra.mxu0 %v252
        %342 = vmatprep.subr.mxu0 0.0
        %343 = vmatpush1.msra.mxu0 %v251
        %344 = vmatprep.subr.mxu0 0.0
        %345 = vmatpush1.msra.mxu0 %v250
        %346 = vmatprep.subr.mxu0 0.0
        %347 = vmatpush2.msra.mxu0 0.0
        %348 = vmatprep.subr.mxu0 0.0
        %349 = vmatpush2.msra.mxu0 0.0
        %350 = vmatprep.subr.mxu0 0.0
        %351 = vmatpush2.msra.mxu0 0.0
        %352 = vmatprep.subr.mxu0 0.0
        %353 = vmatpush2.msra.mxu0 0.0
        %354 = vmatprep.subr.mxu0 0.0
        %355 = vmatpush2.msra.mxu0 0.0
        %356 = vmatprep.subr.mxu0 0.0
        %357 = vmatpush2.msra.mxu0 0.0
        %358 = vmatprep.subr.mxu0 0.0
        %359 = vmatpush2.msra.mxu0 0.0
        %360 = vmatprep.subr.mxu0 0.0
        %361 = vmatpush2.msra.mxu0 0.0
        %362 = vmatprep.subr.mxu0 0.0
        %363 = vmatpush2.msra.mxu0 0.0
        %364 = vmatprep.subr.mxu0 0.0
        %365 = vmatpush2.msra.mxu0 0.0
        %366 = vmatprep.subr.mxu0 0.0
        %367 = vmatpush2.msra.mxu0 0.0
        %368 = vmatprep.subr.mxu0 0.0
        %369 = vmatpush2.msra.mxu0 0.0
        %370 = vmatprep.subr.mxu0 0.0
        %371 = vmatpush2.msra.mxu0 0.0
        %372 = vmatprep.subr.mxu0 0.0
        %373 = vmatpush2.msra.mxu0 0.0
        %374 = vmatprep.subr.mxu0 0.0
        %375 = vmatpush2.msra.mxu0 0.0
        %376 = vmatprep.subr.mxu0 0.0
        %377 = vmatpush2.msra.mxu0 0.0
        %378 = vmatprep.mubr.f32.mxu0 0.0
        %379 = vmatmul.mubr.f32.gmra.mxu0 %v267
        %v380 = vpop.f32.mrf.mxu0
        %v381 = vadd.f32 %v263, %v380
        %v382 = vpop.f32.mrf.mxu0
        %383 = vmatprep.mubr.f32.mxu0 0.0
        %384 = vmatmul.mubr.f32.gmra.mxu0 %v270
        %v385 = vpop.f32.mrf.mxu0
        %v386 = vadd.f32 %v263, %v385
        %v387 = vpop.f32.mrf.mxu0
        %388 = vmatprep.mubr.f32.mxu0 0.0
        %389 = vmatmul.mubr.f32.gmra.mxu0 %v273
        %v390 = vpop.f32.mrf.mxu0
        %v391 = vadd.f32 %v263, %v390
        %v392 = vpop.f32.mrf.mxu0
        %393 = vmatprep.mubr.f32.mxu0 0.0
        %394 = vmatmul.mubr.f32.gmra.mxu0 %v276
        %v395 = vpop.f32.mrf.mxu0
        %v396 = vadd.f32 %v263, %v395
        %v397 = vpop.f32.mrf.mxu0
        %398 = vmatprep.mubr.f32.mxu0 0.0
        %399 = vmatmul.mubr.f32.gmra.mxu0 %v279
        %v400 = vpop.f32.mrf.mxu0
        %v401 = vadd.f32 %v263, %v400
        %v402 = vpop.f32.mrf.mxu0
        %403 = vmatprep.mubr.f32.mxu0 0.0
        %404 = vmatmul.mubr.f32.gmra.mxu0 %v282
        %v405 = vpop.f32.mrf.mxu0
        %v406 = vadd.f32 %v263, %v405
        %v407 = vpop.f32.mrf.mxu0
        %408 = vmatprep.mubr.f32.mxu0 0.0
        %409 = vmatmul.mubr.f32.gmra.mxu0 %v285
        %v410 = vpop.f32.mrf.mxu0
        %v411 = vadd.f32 %v263, %v410
        %v412 = vpop.f32.mrf.mxu0
        %413 = vmatprep.mubr.f32.mxu0 0.0
        %414 = vmatmul.mubr.f32.gmra.mxu0 %v288
        %v415 = vpop.f32.mrf.mxu0
        %v416 = vadd.f32 %v263, %v415
        %v417 = vpop.f32.mrf.mxu0
        %418 = vmatprep.mubr.f32.mxu0 0.0
        %419 = vmatmul.mubr.f32.gmra.mxu0 %v291
        %v420 = vpop.f32.mrf.mxu0
        %v421 = vadd.f32 %v263, %v420
        %v422 = vpop.f32.mrf.mxu0
        %423 = vmatprep.mubr.f32.mxu0 0.0
        %424 = vmatmul.mubr.f32.gmra.mxu0 %v294
        %v425 = vpop.f32.mrf.mxu0
        %v426 = vadd.f32 %v263, %v425
        %v427 = vpop.f32.mrf.mxu0
        %428 = vmatprep.mubr.f32.mxu0 0.0
        %429 = vmatmul.mubr.f32.gmra.mxu0 %v297
        %v430 = vpop.f32.mrf.mxu0
        %v431 = vadd.f32 %v263, %v430
        %v432 = vpop.f32.mrf.mxu0
        %433 = vmatprep.mubr.f32.mxu0 0.0
        %434 = vmatmul.mubr.f32.gmra.mxu0 %v300
        %v435 = vpop.f32.mrf.mxu0
        %v436 = vadd.f32 %v263, %v435
        %v437 = vpop.f32.mrf.mxu0
        %438 = vmatprep.mubr.f32.mxu0 0.0
        %439 = vmatmul.mubr.f32.gmra.mxu0 %v303
        %v440 = vpop.f32.mrf.mxu0
        %v441 = vadd.f32 %v263, %v440
        %v442 = vpop.f32.mrf.mxu0
        %443 = vmatprep.mubr.f32.mxu0 0.0
        %444 = vmatmul.mubr.f32.gmra.mxu0 %v306
        %v445 = vpop.f32.mrf.mxu0
        %v446 = vadd.f32 %v263, %v445
        %v447 = vpop.f32.mrf.mxu0
        %448 = vmatprep.mubr.f32.mxu0 0.0
        %449 = vmatmul.mubr.f32.gmra.mxu0 %v309
        %v450 = vpop.f32.mrf.mxu0
        %v451 = vadd.f32 %v263, %v450
        %v452 = vpop.f32.mrf.mxu0
        %453 = vmatprep.mubr.f32.mxu0 0.0
        %454 = vmatmul.mubr.f32.gmra.mxu0 %v312
        %v455 = vpop.f32.mrf.mxu0
        %v456 = vadd.f32 %v263, %v455
        %v457 = vpop.f32.mrf.mxu0
        %458 = vdwg.mxu0
        %459 = vst [vmem:[%s214] sm:$0xff] %v381
        %460 = vst [vmem:[%s214 + $0x8] sm:$0xff] %v386
        %461 = vst [vmem:[%s214 + $0x10] sm:$0xff] %v391
        %462 = vst [vmem:[%s214 + $0x18] sm:$0xff] %v396
        %463 = vst [vmem:[%s214 + $0x20] sm:$0xff] %v401
        %464 = vst [vmem:[%s214 + $0x28] sm:$0xff] %v406
        %465 = vst [vmem:[%s214 + $0x30] sm:$0xff] %v411
        %466 = vst [vmem:[%s214 + $0x38] sm:$0xff] %v416
        %467 = vst [vmem:[%s214 + $0x40] sm:$0xff] %v421
        %468 = vst [vmem:[%s214 + $0x48] sm:$0xff] %v426
        %469 = vst [vmem:[%s214 + $0x50] sm:$0xff] %v431
        %470 = vst [vmem:[%s214 + $0x58] sm:$0xff] %v436
        %471 = vst [vmem:[%s214 + $0x60] sm:$0xff] %v441
        %472 = vst [vmem:[%s214 + $0x68] sm:$0xff] %v446
        %473 = vst [vmem:[%s214 + $0x70] sm:$0xff] %v451
        %474 = vst [vmem:[%s214 + $0x78] sm:$0xff] %v456
        %s475 = sand.u32 %s119, 1
        %s476 = scalar_lea.sflag [#allocation3], %s475
        %s477 = sand.u32 %s119, 1
        %s478 = smul.addr %s477, 128
        %s479 = scalar_lea.vmem [#allocation2], %s478
        // Predicated region
        $region33: #{tpu_custom_call.1} parent=31 // pred_check
          %p480 = pneg %p129
        $region34: #{tpu_custom_call.1} parent=31 // pred_check_branch
          %482 = sbr.rel (%p480) target = $region36
        $region35: #{tpu_custom_call.1} parent=31 // pred_region
          %s483 = smul.u32 16, %s22
          %s485 = ssub.s32 2048, 2048
          %486 = vsyncadd %s476, %s485
          %s487 = smul.addr %s21, 32
          %s488 = sadd.s32 %s483, %s487
          %s489 = smul.addr %s488, 128
          %s490 = scalar_lea.hbm %s3, %s489
          %s491 = sshll.u32 %s479, 4
          %s492 = int_to_ptr.vmem [resolvable:$true] %s491
          %497 = dma.vmem_to_hbm [thread:$0]  %s492, 2048, %s490, %s476, 128, 128, 8
        $region36: #{tpu_custom_call.1} parent=31 // pred_fallthru
          _
      $region32: #{tpu_custom_call.1} parent=5 // pred_fallthru
        _
      %p498 = scmp.le.s32.totalorder 2, %s12
      // Predicated region
      $region37: #{tpu_custom_call.1} parent=5 // pred_check
        %p499 = pneg %p498
      $region38: #{tpu_custom_call.1} parent=5 // pred_check_branch
        %501 = sbr.rel (%p499) target = $region40
      $region39: #{tpu_custom_call.1} parent=5 // pred_region
        %s502 = ssub.s32 %s12, 2
        // Predicated region
        $region41: #{tpu_custom_call.1} parent=39 // pred_check
          %p503 = pneg %p135
        $region42: #{tpu_custom_call.1} parent=39 // pred_check_branch
          %505 = sbr.rel (%p503) target = $region44
        $region43: #{tpu_custom_call.1} parent=39 // pred_region
          %s506 = sand.u32 %s120, 1
          %s507 = scalar_lea.sflag [#allocation3], %s506
          %s508 = sand.u32 %s120, 1
          %s509 = smul.addr %s508, 128
          %s510 = scalar_lea.vmem [#allocation2], %s509
          %511 = dma.done %s507, 2048
        $region44: #{tpu_custom_call.1} parent=39 // pred_fallthru
          _
      $region40: #{tpu_custom_call.1} parent=5 // pred_fallthru
        _
    $region6: #{tpu_custom_call.1} parent=1 // loop_footer
      %s16 = sadd.s32 1, %s12
    $region7: #{tpu_custom_call.1} parent=1 // loop_footer_branch
      %11 = sbr.rel target = $region3
    $region8: #{tpu_custom_call.1} parent=1 // loop_exit
      _
    %512 = vsyncpa [#allocation3], 1
    %s513 = scalar_lea.sflag [#allocation3], 1
    %514 = vsyncpa %s513, 1

</llo_original>
